<compile_context>
chip_gen: v7x
topology: tpu7x:2x2x1
jax: 0.10.0
libtpu: 0.0.40
codegen_flags: <defaults>
</compile_context>

<pallas_src>
import functools

import jax
import jax.numpy as jnp
from jax.experimental import pallas as pl
from jax.experimental.pallas import tpu as pltpu

LANE = 128
SUBLANE = 8
LN_EPS = 1e-5          # PyTorch nn.LayerNorm default eps
WEIGHTS_FINAL_INIT = 0.003
BIAS_FINAL_INIT = 0.0003


def _round_up(n, m):
    return ((n + m - 1) // m) * m


def _ln_relu(z, gamma, beta, d_true):
    """LayerNorm over the true feature count + ReLU, on a lane-padded tile.

    Padded columns of z are exactly 0 and padded gamma/beta are 0, so padded
    columns stay 0 after this op and contribute nothing downstream.
    """
    d_pad = z.shape[-1]
    inv_d = 1.0 / float(d_true)
    mean = jnp.sum(z, axis=-1, keepdims=True) * inv_d
    centered = z - mean
    if d_pad != d_true:
        lane = jax.lax.broadcasted_iota(jnp.int32, (1, d_pad), 1)
        masked = jnp.where(lane < d_true, centered, 0.0)
    else:
        masked = centered
    var = jnp.sum(masked * masked, axis=-1, keepdims=True) * inv_d
    inv_std = jax.lax.rsqrt(var + LN_EPS)
    y = centered * inv_std * gamma + beta
    return jnp.maximum(y, 0.0)


def _critic_kernel(x_ref, a_ref,
                   w1_ref, b1_ref, g1_ref, be1_ref,
                   w2x_ref, w2a_ref, b2_ref, g2_ref, be2_ref,
                   w3_ref, b3_ref, g3_ref, be3_ref,
                   w4_ref, b4_ref,
                   o_ref, *, h0, h1, h2):
    x = x_ref[...]          # (TILE_B, S_pad), f32
    a = a_ref[...]          # (TILE_B, A_pad), f32

    # fc1 -> LayerNorm -> ReLU
    z1 = jnp.dot(x, w1_ref[...], preferred_element_type=jnp.float32) + b1_ref[...]
    h = _ln_relu(z1, g1_ref[...], be1_ref[...], h0)

    # fc2 over cat([h, actions]) == h @ W2[:h0] + actions @ W2[h0:]
    z2 = (jnp.dot(h, w2x_ref[...], preferred_element_type=jnp.float32)
          + jnp.dot(a, w2a_ref[...], preferred_element_type=jnp.float32)
          + b2_ref[...])
    h = _ln_relu(z2, g2_ref[...], be2_ref[...], h1)

    # fc3 -> LayerNorm -> ReLU
    z3 = jnp.dot(h, w3_ref[...], preferred_element_type=jnp.float32) + b3_ref[...]
    h = _ln_relu(z3, g3_ref[...], be3_ref[...], h2)

    # final linear (output padded to 128 lanes; only column 0 carries the value)
    v = jnp.dot(h, w4_ref[...], preferred_element_type=jnp.float32) + b4_ref[...]
    o_ref[...] = v.astype(o_ref.dtype)


def critic_forward(in_state, actions, params, *, tile_b=256):
    """in_state: [B, S], actions: [B, A].  params use [in, out] weight layout."""
    x = in_state.astype(jnp.float32)   # mirrors in_state.float()
    a = actions.astype(jnp.float32)    # mirrors actions.float()

    B, S = x.shape
    A = a.shape[1]
    h0 = params["w1"].shape[1]
    h1 = params["w2"].shape[1]
    h2 = params["w3"].shape[1]

    # Lane padding (zero pad -> mathematically a no-op, see kernel comments).
    S_p, A_p = _round_up(S, LANE), _round_up(A, LANE)
    H0_p, H1_p, H2_p = (_round_up(h0, LANE), _round_up(h1, LANE),
                        _round_up(h2, LANE))
    OUT_P = LANE  # pad scalar value output to a full 128-lane vector

    # Batch tiling: full (sublane-rounded) batch when small, tile_b otherwise.
    B_min = _round_up(B, SUBLANE)
    if B_min <= tile_b:
        TILE_B, B_p = B_min, B_min
    else:
        TILE_B, B_p = tile_b, _round_up(B, tile_b)

    def pad2(arr, r, c):
        return jnp.pad(arr, ((0, r - arr.shape[0]), (0, c - arr.shape[1])))

    x_p = pad2(x, B_p, S_p)
    a_p = pad2(a, B_p, A_p)

    w1 = pad2(params["w1"], S_p, H0_p)
    b1 = pad2(params["b1"], 1, H0_p)
    g1 = pad2(params["g1"], 1, H0_p)
    be1 = pad2(params["beta1"], 1, H0_p)

    w2 = params["w2"]                      # [(h0 + A), h1]
    w2x = pad2(w2[:h0, :], H0_p, H1_p)     # rows matching the hidden part
    w2a = pad2(w2[h0:, :], A_p, H1_p)      # rows matching the action part
    b2 = pad2(params["b2"], 1, H1_p)
    g2 = pad2(params["g2"], 1, H1_p)
    be2 = pad2(params["beta2"], 1, H1_p)

    w3 = pad2(params["w3"], H1_p, H2_p)
    b3 = pad2(params["b3"], 1, H2_p)
    g3 = pad2(params["g3"], 1, H2_p)
    be3 = pad2(params["beta3"], 1, H2_p)

    w4 = pad2(params["w4"], H2_p, OUT_P)
    b4 = pad2(params["b4"], 1, OUT_P)

    args = (x_p, a_p, w1, b1, g1, be1, w2x, w2a, b2, g2, be2,
            w3, b3, g3, be3, w4, b4)

    def batch_tile(cols):
        return pl.BlockSpec((TILE_B, cols), lambda i: (i, 0))

    def resident(arr):  # full array, same block every step -> stays in VMEM
        return pl.BlockSpec(arr.shape, lambda i: (0, 0))

    in_specs = [batch_tile(S_p), batch_tile(A_p)] + [resident(z) for z in args[2:]]

    flops = 2 * B_p * (S_p * H0_p + H0_p * H1_p + A_p * H1_p
                       + H1_p * H2_p + H2_p * OUT_P)
    bytes_accessed = sum(int(z.size) * 4 for z in args) + B_p * OUT_P * 4
    cost = pl.CostEstimate(flops=flops, transcendentals=3 * B_p,
                           bytes_accessed=bytes_accessed)

    kernel = functools.partial(_critic_kernel, h0=h0, h1=h1, h2=h2)

    out_p = pl.pallas_call(
        kernel,
        out_shape=jax.ShapeDtypeStruct((B_p, OUT_P), jnp.float32),
        grid=(B_p // TILE_B,),
        in_specs=in_specs,
        out_specs=batch_tile(OUT_P),
        compiler_params=pltpu.CompilerParams(
            dimension_semantics=("parallel",)),   # shard batch tiles over TCs
        cost_estimate=cost,
    )(*args)

    return out_p[:B, :1]


def init_params(key, in_state, hidden, n_actions):
    """Mimics the PyTorch Critic init (fan_in uniform; tiny final layer)."""
    h0, h1, h2 = hidden

    def linear(k, fan_in_dim, fan_out_dim):
        kw, kb = jax.random.split(k)
        wb = float(fan_in_dim) ** -0.5   # fan_in_uniform_init on weight (size(-1)=in)
        bb = float(fan_out_dim) ** -0.5  # fan_in_uniform_init on bias (size(-1)=out)
        w = jax.random.uniform(kw, (fan_in_dim, fan_out_dim), jnp.float32,
                               minval=-wb, maxval=wb)
        b = jax.random.uniform(kb, (1, fan_out_dim), jnp.float32,
                               minval=-bb, maxval=bb)
        return w, b

    keys = jax.random.split(key, 4)
    params = {}
    params["w1"], params["b1"] = linear(keys[0], in_state, h0)
    params["g1"] = jnp.ones((1, h0), jnp.float32)
    params["beta1"] = jnp.zeros((1, h0), jnp.float32)
    params["w2"], params["b2"] = linear(keys[1], h0 + n_actions, h1)
    params["g2"] = jnp.ones((1, h1), jnp.float32)
    params["beta2"] = jnp.zeros((1, h1), jnp.float32)
    params["w3"], params["b3"] = linear(keys[2], h1, h2)
    params["g3"] = jnp.ones((1, h2), jnp.float32)
    params["beta3"] = jnp.zeros((1, h2), jnp.float32)
    kw, kb = jax.random.split(keys[3])
    params["w4"] = jax.random.uniform(kw, (h2, 1), jnp.float32,
                                      minval=-WEIGHTS_FINAL_INIT,
                                      maxval=WEIGHTS_FINAL_INIT)
    params["b4"] = jax.random.uniform(kb, (1, 1), jnp.float32,
                                      minval=-BIAS_FINAL_INIT,
                                      maxval=BIAS_FINAL_INIT)
    return params


def reference_forward(in_state, actions, params):
    x = in_state.astype(jnp.float32)
    a = actions.astype(jnp.float32)
    hp = jax.lax.Precision.HIGHEST

    def ln(z, g, b):
        mean = jnp.mean(z, axis=-1, keepdims=True)
        var = jnp.mean((z - mean) ** 2, axis=-1, keepdims=True)
        return (z - mean) / jnp.sqrt(var + LN_EPS) * g + b

    h = jnp.maximum(ln(jnp.dot(x, params["w1"], precision=hp) + params["b1"],
                       params["g1"], params["beta1"]), 0.0)
    h = jnp.concatenate([h, a], axis=1)
    h = jnp.maximum(ln(jnp.dot(h, params["w2"], precision=hp) + params["b2"],
                       params["g2"], params["beta2"]), 0.0)
    h = jnp.maximum(ln(jnp.dot(h, params["w3"], precision=hp) + params["b3"],
                       params["g3"], params["beta3"]), 0.0)
    return jnp.dot(h, params["w4"], precision=hp) + params["b4"]


if __name__ == "__main__":
    in_state_dim = 24
    n_actions = 4
    hidden = (64, 48, 32)
    batch = 16

    key = jax.random.PRNGKey(0)
    key, ks, ka = jax.random.split(key, 3)
    state = jax.random.normal(ks, (batch, in_state_dim), jnp.float32)
    actions = jax.random.uniform(ka, (batch, n_actions), jnp.float32,
                                 minval=-1.0, maxval=1.0)
    params = init_params(key, in_state_dim, hidden, n_actions)

    v = critic_forward(state, actions, params)
    v = jax.block_until_ready(v)

    ref = reference_forward(state, actions, params)
    assert v.shape == (batch, 1), f"bad output shape {v.shape}"
    assert jnp.allclose(v, ref, atol=2e-4, rtol=2e-4), "mismatch vs JAX reference"

    print("KERNEL_OK")
</pallas_src>

<mosaic_0001>
module attributes {stable_mosaic.version = 11 : i64} {
  func.func @_critic_kernel(%arg0: i32, %arg1: memref<16x128xf32, #tpu.memory_space<vmem>>, %arg2: memref<16x128xf32, #tpu.memory_space<vmem>>, %arg3: memref<128x128xf32, #tpu.memory_space<vmem>>, %arg4: memref<1x128xf32, #tpu.memory_space<vmem>>, %arg5: memref<1x128xf32, #tpu.memory_space<vmem>>, %arg6: memref<1x128xf32, #tpu.memory_space<vmem>>, %arg7: memref<128x128xf32, #tpu.memory_space<vmem>>, %arg8: memref<128x128xf32, #tpu.memory_space<vmem>>, %arg9: memref<1x128xf32, #tpu.memory_space<vmem>>, %arg10: memref<1x128xf32, #tpu.memory_space<vmem>>, %arg11: memref<1x128xf32, #tpu.memory_space<vmem>>, %arg12: memref<128x128xf32, #tpu.memory_space<vmem>>, %arg13: memref<1x128xf32, #tpu.memory_space<vmem>>, %arg14: memref<1x128xf32, #tpu.memory_space<vmem>>, %arg15: memref<1x128xf32, #tpu.memory_space<vmem>>, %arg16: memref<128x128xf32, #tpu.memory_space<vmem>>, %arg17: memref<1x128xf32, #tpu.memory_space<vmem>>, %arg18: memref<16x128xf32, #tpu.memory_space<vmem>>) attributes {dimension_semantics = [#tpu.dimension_semantics<parallel>], iteration_bounds = array<i64: 1>, scalar_prefetch = 0 : i64, scratch_operands = 0 : i64, tpu.core_type = #tpu.core_type<tc>, window_params = [{transform_indices = @transform_0, window_bounds = array<i64: 16, 128>}, {transform_indices = @transform_1, window_bounds = array<i64: 16, 128>}, {pipeline_mode = #tpu.pipeline_mode<synchronous>, transform_indices = @transform_2, window_bounds = array<i64: 128, 128>}, {pipeline_mode = #tpu.pipeline_mode<synchronous>, transform_indices = @transform_3, window_bounds = array<i64: 1, 128>}, {pipeline_mode = #tpu.pipeline_mode<synchronous>, transform_indices = @transform_4, window_bounds = array<i64: 1, 128>}, {pipeline_mode = #tpu.pipeline_mode<synchronous>, transform_indices = @transform_5, window_bounds = array<i64: 1, 128>}, {pipeline_mode = #tpu.pipeline_mode<synchronous>, transform_indices = @transform_6, window_bounds = array<i64: 128, 128>}, {pipeline_mode = #tpu.pipeline_mode<synchronous>, transform_indices = @transform_7, window_bounds = array<i64: 128, 128>}, {pipeline_mode = #tpu.pipeline_mode<synchronous>, transform_indices = @transform_8, window_bounds = array<i64: 1, 128>}, {pipeline_mode = #tpu.pipeline_mode<synchronous>, transform_indices = @transform_9, window_bounds = array<i64: 1, 128>}, {pipeline_mode = #tpu.pipeline_mode<synchronous>, transform_indices = @transform_10, window_bounds = array<i64: 1, 128>}, {pipeline_mode = #tpu.pipeline_mode<synchronous>, transform_indices = @transform_11, window_bounds = array<i64: 128, 128>}, {pipeline_mode = #tpu.pipeline_mode<synchronous>, transform_indices = @transform_12, window_bounds = array<i64: 1, 128>}, {pipeline_mode = #tpu.pipeline_mode<synchronous>, transform_indices = @transform_13, window_bounds = array<i64: 1, 128>}, {pipeline_mode = #tpu.pipeline_mode<synchronous>, transform_indices = @transform_14, window_bounds = array<i64: 1, 128>}, {pipeline_mode = #tpu.pipeline_mode<synchronous>, transform_indices = @transform_15, window_bounds = array<i64: 128, 128>}, {pipeline_mode = #tpu.pipeline_mode<synchronous>, transform_indices = @transform_16, window_bounds = array<i64: 1, 128>}, {transform_indices = @transform_17, window_bounds = array<i64: 16, 128>}]} {
    %c0 = arith.constant 0 : index
    %c0_0 = arith.constant 0 : index
    %0 = vector.load %arg1[%c0, %c0_0] : memref<16x128xf32, #tpu.memory_space<vmem>>, vector<16x128xf32>
    %c0_1 = arith.constant 0 : index
    %c0_2 = arith.constant 0 : index
    %1 = vector.load %arg2[%c0_1, %c0_2] : memref<16x128xf32, #tpu.memory_space<vmem>>, vector<16x128xf32>
    %c0_3 = arith.constant 0 : index
    %c0_4 = arith.constant 0 : index
    %2 = vector.load %arg3[%c0_3, %c0_4] : memref<128x128xf32, #tpu.memory_space<vmem>>, vector<128x128xf32>
    %cst = arith.constant dense<0.000000e+00> : vector<16x128xf32>
    %3 = tpu.matmul %0, %2, %cst {dimension_numbers = #tpu.dot_dimension_numbers<[1], [0], [0], [1], [0, 0, 1, 1], [], []>} : vector<16x128xf32>, vector<128x128xf32>, vector<16x128xf32> -> vector<16x128xf32>
    %c0_5 = arith.constant 0 : index
    %c0_6 = arith.constant 0 : index
    %4 = vector.load %arg4[%c0_5, %c0_6] : memref<1x128xf32, #tpu.memory_space<vmem>>, vector<1x128xf32>
    %5 = vector.broadcast %4 : vector<1x128xf32> to vector<16x128xf32>
    %6 = arith.addf %3, %5 : vector<16x128xf32>
    %c0_7 = arith.constant 0 : index
    %c0_8 = arith.constant 0 : index
    %7 = vector.load %arg5[%c0_7, %c0_8] : memref<1x128xf32, #tpu.memory_space<vmem>>, vector<1x128xf32>
    %c0_9 = arith.constant 0 : index
    %c0_10 = arith.constant 0 : index
    %8 = vector.load %arg6[%c0_9, %c0_10] : memref<1x128xf32, #tpu.memory_space<vmem>>, vector<1x128xf32>
    %cst_11 = arith.constant dense<0.000000e+00> : vector<16xf32>
    %9 = vector.multi_reduction <add>, %6, %cst_11 [1] : vector<16x128xf32> to vector<16xf32>
    %10 = vector.shape_cast %9 : vector<16xf32> to vector<16x1xf32>
    %cst_12 = arith.constant 1.562500e-02 : f32
    %11 = vector.broadcast %cst_12 : f32 to vector<16x1xf32>
    %12 = arith.mulf %10, %11 : vector<16x1xf32>
    %13 = vector.broadcast %12 : vector<16x1xf32> to vector<16x128xf32>
    %14 = arith.subf %6, %13 : vector<16x128xf32>
    %15 = tpu.iota {dimensions = array<i32: 1>} : vector<1x128xi32>
    %c64_i32 = arith.constant 64 : i32
    %16 = vector.broadcast %c64_i32 : i32 to vector<1x128xi32>
    %17 = arith.cmpi slt, %15, %16 : vector<1x128xi32>
    %cst_13 = arith.constant 0.000000e+00 : f32
    %18 = vector.shape_cast %17 : vector<1x128xi1> to vector<1x128xi1>
    %19 = vector.broadcast %18 : vector<1x128xi1> to vector<16x128xi1>
    %20 = vector.broadcast %cst_13 : f32 to vector<16x128xf32>
    %21 = arith.select %19, %14, %20 : vector<16x128xi1>, vector<16x128xf32>
    %22 = arith.mulf %21, %21 : vector<16x128xf32>
    %cst_14 = arith.constant dense<0.000000e+00> : vector<16xf32>
    %23 = vector.multi_reduction <add>, %22, %cst_14 [1] : vector<16x128xf32> to vector<16xf32>
    %24 = vector.shape_cast %23 : vector<16xf32> to vector<16x1xf32>
    %cst_15 = arith.constant 1.562500e-02 : f32
    %25 = vector.broadcast %cst_15 : f32 to vector<16x1xf32>
    %26 = arith.mulf %24, %25 : vector<16x1xf32>
    %cst_16 = arith.constant 9.99999974E-6 : f32
    %27 = vector.broadcast %cst_16 : f32 to vector<16x1xf32>
    %28 = arith.addf %26, %27 : vector<16x1xf32>
    %29 = math.rsqrt %28 : vector<16x1xf32>
    %30 = vector.broadcast %29 : vector<16x1xf32> to vector<16x128xf32>
    %31 = arith.mulf %14, %30 : vector<16x128xf32>
    %32 = vector.broadcast %7 : vector<1x128xf32> to vector<16x128xf32>
    %33 = arith.mulf %31, %32 : vector<16x128xf32>
    %34 = vector.broadcast %8 : vector<1x128xf32> to vector<16x128xf32>
    %35 = arith.addf %33, %34 : vector<16x128xf32>
    %cst_17 = arith.constant 0.000000e+00 : f32
    %36 = vector.broadcast %cst_17 : f32 to vector<16x128xf32>
    %37 = arith.maximumf %35, %36 : vector<16x128xf32>
    %c0_18 = arith.constant 0 : index
    %c0_19 = arith.constant 0 : index
    %38 = vector.load %arg7[%c0_18, %c0_19] : memref<128x128xf32, #tpu.memory_space<vmem>>, vector<128x128xf32>
    %cst_20 = arith.constant dense<0.000000e+00> : vector<16x128xf32>
    %39 = tpu.matmul %37, %38, %cst_20 {dimension_numbers = #tpu.dot_dimension_numbers<[1], [0], [0], [1], [0, 0, 1, 1], [], []>} : vector<16x128xf32>, vector<128x128xf32>, vector<16x128xf32> -> vector<16x128xf32>
    %c0_21 = arith.constant 0 : index
    %c0_22 = arith.constant 0 : index
    %40 = vector.load %arg8[%c0_21, %c0_22] : memref<128x128xf32, #tpu.memory_space<vmem>>, vector<128x128xf32>
    %cst_23 = arith.constant dense<0.000000e+00> : vector<16x128xf32>
    %41 = tpu.matmul %1, %40, %cst_23 {dimension_numbers = #tpu.dot_dimension_numbers<[1], [0], [0], [1], [0, 0, 1, 1], [], []>} : vector<16x128xf32>, vector<128x128xf32>, vector<16x128xf32> -> vector<16x128xf32>
    %42 = arith.addf %39, %41 : vector<16x128xf32>
    %c0_24 = arith.constant 0 : index
    %c0_25 = arith.constant 0 : index
    %43 = vector.load %arg9[%c0_24, %c0_25] : memref<1x128xf32, #tpu.memory_space<vmem>>, vector<1x128xf32>
    %44 = vector.broadcast %43 : vector<1x128xf32> to vector<16x128xf32>
    %45 = arith.addf %42, %44 : vector<16x128xf32>
    %c0_26 = arith.constant 0 : index
    %c0_27 = arith.constant 0 : index
    %46 = vector.load %arg10[%c0_26, %c0_27] : memref<1x128xf32, #tpu.memory_space<vmem>>, vector<1x128xf32>
    %c0_28 = arith.constant 0 : index
    %c0_29 = arith.constant 0 : index
    %47 = vector.load %arg11[%c0_28, %c0_29] : memref<1x128xf32, #tpu.memory_space<vmem>>, vector<1x128xf32>
    %cst_30 = arith.constant dense<0.000000e+00> : vector<16xf32>
    %48 = vector.multi_reduction <add>, %45, %cst_30 [1] : vector<16x128xf32> to vector<16xf32>
    %49 = vector.shape_cast %48 : vector<16xf32> to vector<16x1xf32>
    %cst_31 = arith.constant 0.020833334 : f32
    %50 = vector.broadcast %cst_31 : f32 to vector<16x1xf32>
    %51 = arith.mulf %49, %50 : vector<16x1xf32>
    %52 = vector.broadcast %51 : vector<16x1xf32> to vector<16x128xf32>
    %53 = arith.subf %45, %52 : vector<16x128xf32>
    %54 = tpu.iota {dimensions = array<i32: 1>} : vector<1x128xi32>
    %c48_i32 = arith.constant 48 : i32
    %55 = vector.broadcast %c48_i32 : i32 to vector<1x128xi32>
    %56 = arith.cmpi slt, %54, %55 : vector<1x128xi32>
    %cst_32 = arith.constant 0.000000e+00 : f32
    %57 = vector.shape_cast %56 : vector<1x128xi1> to vector<1x128xi1>
    %58 = vector.broadcast %57 : vector<1x128xi1> to vector<16x128xi1>
    %59 = vector.broadcast %cst_32 : f32 to vector<16x128xf32>
    %60 = arith.select %58, %53, %59 : vector<16x128xi1>, vector<16x128xf32>
    %61 = arith.mulf %60, %60 : vector<16x128xf32>
    %cst_33 = arith.constant dense<0.000000e+00> : vector<16xf32>
    %62 = vector.multi_reduction <add>, %61, %cst_33 [1] : vector<16x128xf32> to vector<16xf32>
    %63 = vector.shape_cast %62 : vector<16xf32> to vector<16x1xf32>
    %cst_34 = arith.constant 0.020833334 : f32
    %64 = vector.broadcast %cst_34 : f32 to vector<16x1xf32>
    %65 = arith.mulf %63, %64 : vector<16x1xf32>
    %cst_35 = arith.constant 9.99999974E-6 : f32
    %66 = vector.broadcast %cst_35 : f32 to vector<16x1xf32>
    %67 = arith.addf %65, %66 : vector<16x1xf32>
    %68 = math.rsqrt %67 : vector<16x1xf32>
    %69 = vector.broadcast %68 : vector<16x1xf32> to vector<16x128xf32>
    %70 = arith.mulf %53, %69 : vector<16x128xf32>
    %71 = vector.broadcast %46 : vector<1x128xf32> to vector<16x128xf32>
    %72 = arith.mulf %70, %71 : vector<16x128xf32>
    %73 = vector.broadcast %47 : vector<1x128xf32> to vector<16x128xf32>
    %74 = arith.addf %72, %73 : vector<16x128xf32>
    %cst_36 = arith.constant 0.000000e+00 : f32
    %75 = vector.broadcast %cst_36 : f32 to vector<16x128xf32>
    %76 = arith.maximumf %74, %75 : vector<16x128xf32>
    %c0_37 = arith.constant 0 : index
    %c0_38 = arith.constant 0 : index
    %77 = vector.load %arg12[%c0_37, %c0_38] : memref<128x128xf32, #tpu.memory_space<vmem>>, vector<128x128xf32>
    %cst_39 = arith.constant dense<0.000000e+00> : vector<16x128xf32>
    %78 = tpu.matmul %76, %77, %cst_39 {dimension_numbers = #tpu.dot_dimension_numbers<[1], [0], [0], [1], [0, 0, 1, 1], [], []>} : vector<16x128xf32>, vector<128x128xf32>, vector<16x128xf32> -> vector<16x128xf32>
    %c0_40 = arith.constant 0 : index
    %c0_41 = arith.constant 0 : index
    %79 = vector.load %arg13[%c0_40, %c0_41] : memref<1x128xf32, #tpu.memory_space<vmem>>, vector<1x128xf32>
    %80 = vector.broadcast %79 : vector<1x128xf32> to vector<16x128xf32>
    %81 = arith.addf %78, %80 : vector<16x128xf32>
    %c0_42 = arith.constant 0 : index
    %c0_43 = arith.constant 0 : index
    %82 = vector.load %arg14[%c0_42, %c0_43] : memref<1x128xf32, #tpu.memory_space<vmem>>, vector<1x128xf32>
    %c0_44 = arith.constant 0 : index
    %c0_45 = arith.constant 0 : index
    %83 = vector.load %arg15[%c0_44, %c0_45] : memref<1x128xf32, #tpu.memory_space<vmem>>, vector<1x128xf32>
    %cst_46 = arith.constant dense<0.000000e+00> : vector<16xf32>
    %84 = vector.multi_reduction <add>, %81, %cst_46 [1] : vector<16x128xf32> to vector<16xf32>
    %85 = vector.shape_cast %84 : vector<16xf32> to vector<16x1xf32>
    %cst_47 = arith.constant 3.125000e-02 : f32
    %86 = vector.broadcast %cst_47 : f32 to vector<16x1xf32>
    %87 = arith.mulf %85, %86 : vector<16x1xf32>
    %88 = vector.broadcast %87 : vector<16x1xf32> to vector<16x128xf32>
    %89 = arith.subf %81, %88 : vector<16x128xf32>
    %90 = tpu.iota {dimensions = array<i32: 1>} : vector<1x128xi32>
    %c32_i32 = arith.constant 32 : i32
    %91 = vector.broadcast %c32_i32 : i32 to vector<1x128xi32>
    %92 = arith.cmpi slt, %90, %91 : vector<1x128xi32>
    %cst_48 = arith.constant 0.000000e+00 : f32
    %93 = vector.shape_cast %92 : vector<1x128xi1> to vector<1x128xi1>
    %94 = vector.broadcast %93 : vector<1x128xi1> to vector<16x128xi1>
    %95 = vector.broadcast %cst_48 : f32 to vector<16x128xf32>
    %96 = arith.select %94, %89, %95 : vector<16x128xi1>, vector<16x128xf32>
    %97 = arith.mulf %96, %96 : vector<16x128xf32>
    %cst_49 = arith.constant dense<0.000000e+00> : vector<16xf32>
    %98 = vector.multi_reduction <add>, %97, %cst_49 [1] : vector<16x128xf32> to vector<16xf32>
    %99 = vector.shape_cast %98 : vector<16xf32> to vector<16x1xf32>
    %cst_50 = arith.constant 3.125000e-02 : f32
    %100 = vector.broadcast %cst_50 : f32 to vector<16x1xf32>
    %101 = arith.mulf %99, %100 : vector<16x1xf32>
    %cst_51 = arith.constant 9.99999974E-6 : f32
    %102 = vector.broadcast %cst_51 : f32 to vector<16x1xf32>
    %103 = arith.addf %101, %102 : vector<16x1xf32>
    %104 = math.rsqrt %103 : vector<16x1xf32>
    %105 = vector.broadcast %104 : vector<16x1xf32> to vector<16x128xf32>
    %106 = arith.mulf %89, %105 : vector<16x128xf32>
    %107 = vector.broadcast %82 : vector<1x128xf32> to vector<16x128xf32>
    %108 = arith.mulf %106, %107 : vector<16x128xf32>
    %109 = vector.broadcast %83 : vector<1x128xf32> to vector<16x128xf32>
    %110 = arith.addf %108, %109 : vector<16x128xf32>
    %cst_52 = arith.constant 0.000000e+00 : f32
    %111 = vector.broadcast %cst_52 : f32 to vector<16x128xf32>
    %112 = arith.maximumf %110, %111 : vector<16x128xf32>
    %c0_53 = arith.constant 0 : index
    %c0_54 = arith.constant 0 : index
    %113 = vector.load %arg16[%c0_53, %c0_54] : memref<128x128xf32, #tpu.memory_space<vmem>>, vector<128x128xf32>
    %cst_55 = arith.constant dense<0.000000e+00> : vector<16x128xf32>
    %114 = tpu.matmul %112, %113, %cst_55 {dimension_numbers = #tpu.dot_dimension_numbers<[1], [0], [0], [1], [0, 0, 1, 1], [], []>} : vector<16x128xf32>, vector<128x128xf32>, vector<16x128xf32> -> vector<16x128xf32>
    %c0_56 = arith.constant 0 : index
    %c0_57 = arith.constant 0 : index
    %115 = vector.load %arg17[%c0_56, %c0_57] : memref<1x128xf32, #tpu.memory_space<vmem>>, vector<1x128xf32>
    %116 = vector.broadcast %115 : vector<1x128xf32> to vector<16x128xf32>
    %117 = arith.addf %114, %116 : vector<16x128xf32>
    %c0_58 = arith.constant 0 : index
    %c0_59 = arith.constant 0 : index
    %118 = vector.load %arg18[%c0_58, %c0_59] : memref<16x128xf32, #tpu.memory_space<vmem>>, vector<16x128xf32>
    tpu.vector_store %arg18[%c0_58, %c0_59], %117 {strides = array<i32>} : memref<16x128xf32, #tpu.memory_space<vmem>>, vector<16x128xf32>,
    return
  }
  func.func @transform_0(%arg0: i32) -> (i32, i32) {
    %c0_i32 = arith.constant 0 : i32
    %c0_i32_0 = arith.constant 0 : i32
    return %arg0, %c0_i32 : i32, i32
  }
  func.func @transform_1(%arg0: i32) -> (i32, i32) {
    %c0_i32 = arith.constant 0 : i32
    %c0_i32_0 = arith.constant 0 : i32
    return %arg0, %c0_i32 : i32, i32
  }
  func.func @transform_2(%arg0: i32) -> (i32, i32) {
    %c0_i32 = arith.constant 0 : i32
    %c0_i32_0 = arith.constant 0 : i32
    %c0_i32_1 = arith.constant 0 : i32
    return %c0_i32, %c0_i32_0 : i32, i32
  }
  func.func @transform_3(%arg0: i32) -> (i32, i32) {
    %c0_i32 = arith.constant 0 : i32
    %c0_i32_0 = arith.constant 0 : i32
    %c0_i32_1 = arith.constant 0 : i32
    return %c0_i32, %c0_i32_0 : i32, i32
  }
  func.func @transform_4(%arg0: i32) -> (i32, i32) {
    %c0_i32 = arith.constant 0 : i32
    %c0_i32_0 = arith.constant 0 : i32
    %c0_i32_1 = arith.constant 0 : i32
    return %c0_i32, %c0_i32_0 : i32, i32
  }
  func.func @transform_5(%arg0: i32) -> (i32, i32) {
    %c0_i32 = arith.constant 0 : i32
    %c0_i32_0 = arith.constant 0 : i32
    %c0_i32_1 = arith.constant 0 : i32
    return %c0_i32, %c0_i32_0 : i32, i32
  }
  func.func @transform_6(%arg0: i32) -> (i32, i32) {
    %c0_i32 = arith.constant 0 : i32
    %c0_i32_0 = arith.constant 0 : i32
    %c0_i32_1 = arith.constant 0 : i32
    return %c0_i32, %c0_i32_0 : i32, i32
  }
  func.func @transform_7(%arg0: i32) -> (i32, i32) {
    %c0_i32 = arith.constant 0 : i32
    %c0_i32_0 = arith.constant 0 : i32
    %c0_i32_1 = arith.constant 0 : i32
    return %c0_i32, %c0_i32_0 : i32, i32
  }
  func.func @transform_8(%arg0: i32) -> (i32, i32) {
    %c0_i32 = arith.constant 0 : i32
    %c0_i32_0 = arith.constant 0 : i32
    %c0_i32_1 = arith.constant 0 : i32
    return %c0_i32, %c0_i32_0 : i32, i32
  }
  func.func @transform_9(%arg0: i32) -> (i32, i32) {
    %c0_i32 = arith.constant 0 : i32
    %c0_i32_0 = arith.constant 0 : i32
    %c0_i32_1 = arith.constant 0 : i32
    return %c0_i32, %c0_i32_0 : i32, i32
  }
  func.func @transform_10(%arg0: i32) -> (i32, i32) {
    %c0_i32 = arith.constant 0 : i32
    %c0_i32_0 = arith.constant 0 : i32
    %c0_i32_1 = arith.constant 0 : i32
    return %c0_i32, %c0_i32_0 : i32, i32
  }
  func.func @transform_11(%arg0: i32) -> (i32, i32) {
    %c0_i32 = arith.constant 0 : i32
    %c0_i32_0 = arith.constant 0 : i32
    %c0_i32_1 = arith.constant 0 : i32
    return %c0_i32, %c0_i32_0 : i32, i32
  }
  func.func @transform_12(%arg0: i32) -> (i32, i32) {
    %c0_i32 = arith.constant 0 : i32
    %c0_i32_0 = arith.constant 0 : i32
    %c0_i32_1 = arith.constant 0 : i32
    return %c0_i32, %c0_i32_0 : i32, i32
  }
  func.func @transform_13(%arg0: i32) -> (i32, i32) {
    %c0_i32 = arith.constant 0 : i32
    %c0_i32_0 = arith.constant 0 : i32
    %c0_i32_1 = arith.constant 0 : i32
    return %c0_i32, %c0_i32_0 : i32, i32
  }
  func.func @transform_14(%arg0: i32) -> (i32, i32) {
    %c0_i32 = arith.constant 0 : i32
    %c0_i32_0 = arith.constant 0 : i32
    %c0_i32_1 = arith.constant 0 : i32
    return %c0_i32, %c0_i32_0 : i32, i32
  }
  func.func @transform_15(%arg0: i32) -> (i32, i32) {
    %c0_i32 = arith.constant 0 : i32
    %c0_i32_0 = arith.constant 0 : i32
    %c0_i32_1 = arith.constant 0 : i32
    return %c0_i32, %c0_i32_0 : i32, i32
  }
  func.func @transform_16(%arg0: i32) -> (i32, i32) {
    %c0_i32 = arith.constant 0 : i32
    %c0_i32_0 = arith.constant 0 : i32
    %c0_i32_1 = arith.constant 0 : i32
    return %c0_i32, %c0_i32_0 : i32, i32
  }
  func.func @transform_17(%arg0: i32) -> (i32, i32) {
    %c0_i32 = arith.constant 0 : i32
    %c0_i32_0 = arith.constant 0 : i32
    return %arg0, %c0_i32 : i32, i32
  }
}

</mosaic_0001>

<llo_original>
// kernel: tpu_custom_call.1
$region0: #{tpu_custom_call.1}
  #allocation0 [shape = 'u32[]', space=smem, size = 0x4, offset = 0x4, fixed_abs, tag = 'smem constant byte address 0x4 - core index']
  #allocation1 [shape = 'u32[144,128]{1,0:T(1,128)}', space=vmem, size = 0x12000, scoped, tag = 'internal scratch']
  %s0 = inlined_call_operand.hbm [shape: f32[16,128], index: 0, kind: input, shape index: {}]
  %s1 = inlined_call_operand.hbm [shape: f32[16,128], index: 1, kind: input, shape index: {}]
  %s2 = inlined_call_operand.hbm [shape: f32[128,128], index: 2, kind: input, shape index: {}]
  %s3 = inlined_call_operand.vmem [shape: f32[1,128], index: 3, kind: input, shape index: {}]
  %s4 = inlined_call_operand.vmem [shape: f32[1,128], index: 4, kind: input, shape index: {}]
  %s5 = inlined_call_operand.vmem [shape: f32[1,128], index: 5, kind: input, shape index: {}]
  %s6 = inlined_call_operand.hbm [shape: f32[128,128], index: 6, kind: input, shape index: {}]
  %s7 = inlined_call_operand.hbm [shape: f32[128,128], index: 7, kind: input, shape index: {}]
  %s8 = inlined_call_operand.vmem [shape: f32[1,128], index: 8, kind: input, shape index: {}]
  %s9 = inlined_call_operand.vmem [shape: f32[1,128], index: 9, kind: input, shape index: {}]
  %s10 = inlined_call_operand.vmem [shape: f32[1,128], index: 10, kind: input, shape index: {}]
  %s11 = inlined_call_operand.hbm [shape: f32[128,128], index: 11, kind: input, shape index: {}]
  %s12 = inlined_call_operand.vmem [shape: f32[1,128], index: 12, kind: input, shape index: {}]
  %s13 = inlined_call_operand.vmem [shape: f32[1,128], index: 13, kind: input, shape index: {}]
  %s14 = inlined_call_operand.vmem [shape: f32[1,128], index: 14, kind: input, shape index: {}]
  %s15 = inlined_call_operand.hbm [shape: f32[128,128], index: 15, kind: input, shape index: {}]
  %s16 = inlined_call_operand.vmem [shape: f32[1,128], index: 16, kind: input, shape index: {}]
  %s17 = inlined_call_operand.hbm [shape: f32[16,128], index: 17, kind: output, shape index: {}]
  %s18 = sld [smem:[#allocation0]]
  $region106: #{tpu_custom_call.1} parent=0
    _
  %s20 = ssub.s32 1, %s18
  %s21 = scalar_select 0, %s20, %s18
  $region1: #{tpu_custom_call.1} parent=0
    #allocation2 [shape = 'u8[8192]{0}', space=vmem, size = 0x2000, scoped, tag = 'input window, operand 0, single buffered']
    #allocation3 [shape = 's32[1]{0}', space=sflag, size = 0x4, scoped, tag = 'scoped memory for tpu_custom_call.1']
    #allocation4 [shape = 's32[1]{0}', space=sflag, size = 0x4, scoped, tag = 'scoped memory for tpu_custom_call.1']
    #allocation5 [shape = 'u8[8192]{0}', space=vmem, size = 0x2000, scoped, tag = 'input window, operand 1, single buffered']
    #allocation6 [shape = 's32[1]{0}', space=sflag, size = 0x4, scoped, tag = 'scoped memory for tpu_custom_call.1']
    #allocation7 [shape = 'u8[65536]{0}', space=vmem, size = 0x10000, scoped, tag = 'input window, operand 2, single buffered']
    #allocation8 [shape = 'u8[65536]{0}', space=vmem, size = 0x10000, scoped, tag = 'input window, operand 6, single buffered']
    #allocation9 [shape = 's32[1]{0}', space=sflag, size = 0x4, scoped, tag = 'scoped memory for tpu_custom_call.1']
    #allocation10 [shape = 'u8[65536]{0}', space=vmem, size = 0x10000, scoped, tag = 'input window, operand 7, single buffered']
    #allocation11 [shape = 'u8[65536]{0}', space=vmem, size = 0x10000, scoped, tag = 'input window, operand 11, single buffered']
    #allocation12 [shape = 's32[1]{0}', space=sflag, size = 0x4, scoped, tag = 'scoped memory for tpu_custom_call.1']
    #allocation13 [shape = 'u8[65536]{0}', space=vmem, size = 0x10000, scoped, tag = 'input window, operand 15, single buffered']
    #allocation14 [shape = 'u8[8192]{0}', space=vmem, size = 0x2000, scoped, tag = 'output window, operand 0, single buffered']
    %22 = vsyncpa [#allocation3], 0
    %23 = vsyncpa [#allocation6], 0
    %24 = vsyncpa [#allocation9], 0
    %25 = vsyncpa [#allocation12], 0
    %26 = vsyncpa [#allocation4], 0
    // Predicated region
    $region2: #{tpu_custom_call.1} parent=1 // pred_check
      _
    $region3: #{tpu_custom_call.1} parent=1 // pred_check_branch
      %28 = sbr.rel (0) target = $region5
    $region4: #{tpu_custom_call.1} parent=1 // pred_region
      %s30 = ssub.s32 256, 256
      %31 = vsyncadd [#allocation3], %s30
      %s32 = sshll.u32 [#allocation2], 4
      %s33 = int_to_ptr.vmem [resolvable:$true] %s32
      %38 = dma.hbm_to_vmem [thread:$0]  %s0, 256, %s33, [#allocation3], 128, 128, 8
    $region5: #{tpu_custom_call.1} parent=1 // pred_fallthru
      _
    // Predicated region
    $region6: #{tpu_custom_call.1} parent=1 // pred_check
      _
    $region7: #{tpu_custom_call.1} parent=1 // pred_check_branch
      %40 = sbr.rel (0) target = $region9
    $region8: #{tpu_custom_call.1} parent=1 // pred_region
      %s42 = ssub.s32 256, 256
      %43 = vsyncadd [#allocation6], %s42
      %s44 = sshll.u32 [#allocation5], 4
      %s45 = int_to_ptr.vmem [resolvable:$true] %s44
      %50 = dma.hbm_to_vmem [thread:$0]  %s1, 256, %s45, [#allocation6], 128, 128, 8
    $region9: #{tpu_custom_call.1} parent=1 // pred_fallthru
      _
    // Predicated region
    $region10: #{tpu_custom_call.1} parent=1 // pred_check
      _
    $region11: #{tpu_custom_call.1} parent=1 // pred_check_branch
      %52 = sbr.rel (0) target = $region13
    $region12: #{tpu_custom_call.1} parent=1 // pred_region
      %s54 = ssub.s32 2048, 2048
      %55 = vsyncadd [#allocation6], %s54
      %s56 = sshll.u32 [#allocation7], 4
      %s57 = int_to_ptr.vmem [resolvable:$true] %s56
      %62 = dma.hbm_to_vmem [thread:$0]  %s2, 2048, %s57, [#allocation6], 128, 128, 8
    $region13: #{tpu_custom_call.1} parent=1 // pred_fallthru
      _
    // Predicated region
    $region14: #{tpu_custom_call.1} parent=1 // pred_check
      _
    $region15: #{tpu_custom_call.1} parent=1 // pred_check_branch
      %64 = sbr.rel (0) target = $region17
    $region16: #{tpu_custom_call.1} parent=1 // pred_region
      _
    $region17: #{tpu_custom_call.1} parent=1 // pred_fallthru
      _
    // Predicated region
    $region18: #{tpu_custom_call.1} parent=1 // pred_check
      _
    $region19: #{tpu_custom_call.1} parent=1 // pred_check_branch
      %66 = sbr.rel (0) target = $region21
    $region20: #{tpu_custom_call.1} parent=1 // pred_region
      _
    $region21: #{tpu_custom_call.1} parent=1 // pred_fallthru
      _
    // Predicated region
    $region22: #{tpu_custom_call.1} parent=1 // pred_check
      _
    $region23: #{tpu_custom_call.1} parent=1 // pred_check_branch
      %68 = sbr.rel (0) target = $region25
    $region24: #{tpu_custom_call.1} parent=1 // pred_region
      _
    $region25: #{tpu_custom_call.1} parent=1 // pred_fallthru
      _
    // Predicated region
    $region26: #{tpu_custom_call.1} parent=1 // pred_check
      _
    $region27: #{tpu_custom_call.1} parent=1 // pred_check_branch
      %70 = sbr.rel (0) target = $region29
    $region28: #{tpu_custom_call.1} parent=1 // pred_region
      %s72 = ssub.s32 2048, 2048
      %73 = vsyncadd [#allocation9], %s72
      %s74 = sshll.u32 [#allocation8], 4
      %s75 = int_to_ptr.vmem [resolvable:$true] %s74
      %80 = dma.hbm_to_vmem [thread:$0]  %s6, 2048, %s75, [#allocation9], 128, 128, 8
    $region29: #{tpu_custom_call.1} parent=1 // pred_fallthru
      _
    // Predicated region
    $region30: #{tpu_custom_call.1} parent=1 // pred_check
      _
    $region31: #{tpu_custom_call.1} parent=1 // pred_check_branch
      %82 = sbr.rel (0) target = $region33
    $region32: #{tpu_custom_call.1} parent=1 // pred_region
      %s84 = ssub.s32 2048, 2048
      %85 = vsyncadd [#allocation9], %s84
      %s86 = sshll.u32 [#allocation10], 4
      %s87 = int_to_ptr.vmem [resolvable:$true] %s86
      %92 = dma.hbm_to_vmem [thread:$0]  %s7, 2048, %s87, [#allocation9], 128, 128, 8
    $region33: #{tpu_custom_call.1} parent=1 // pred_fallthru
      _
    // Predicated region
    $region34: #{tpu_custom_call.1} parent=1 // pred_check
      _
    $region35: #{tpu_custom_call.1} parent=1 // pred_check_branch
      %94 = sbr.rel (0) target = $region37
    $region36: #{tpu_custom_call.1} parent=1 // pred_region
      _
    $region37: #{tpu_custom_call.1} parent=1 // pred_fallthru
      _
    // Predicated region
    $region38: #{tpu_custom_call.1} parent=1 // pred_check
      _
    $region39: #{tpu_custom_call.1} parent=1 // pred_check_branch
      %96 = sbr.rel (0) target = $region41
    $region40: #{tpu_custom_call.1} parent=1 // pred_region
      _
    $region41: #{tpu_custom_call.1} parent=1 // pred_fallthru
      _
    // Predicated region
    $region42: #{tpu_custom_call.1} parent=1 // pred_check
      _
    $region43: #{tpu_custom_call.1} parent=1 // pred_check_branch
      %98 = sbr.rel (0) target = $region45
    $region44: #{tpu_custom_call.1} parent=1 // pred_region
      _
    $region45: #{tpu_custom_call.1} parent=1 // pred_fallthru
      _
    // Predicated region
    $region46: #{tpu_custom_call.1} parent=1 // pred_check
      _
    $region47: #{tpu_custom_call.1} parent=1 // pred_check_branch
      %100 = sbr.rel (0) target = $region49
    $region48: #{tpu_custom_call.1} parent=1 // pred_region
      %s102 = ssub.s32 2048, 2048
      %103 = vsyncadd [#allocation12], %s102
      %s104 = sshll.u32 [#allocation11], 4
      %s105 = int_to_ptr.vmem [resolvable:$true] %s104
      %110 = dma.hbm_to_vmem [thread:$0]  %s11, 2048, %s105, [#allocation12], 128, 128, 8
    $region49: #{tpu_custom_call.1} parent=1 // pred_fallthru
      _
    // Predicated region
    $region50: #{tpu_custom_call.1} parent=1 // pred_check
      _
    $region51: #{tpu_custom_call.1} parent=1 // pred_check_branch
      %112 = sbr.rel (0) target = $region53
    $region52: #{tpu_custom_call.1} parent=1 // pred_region
      _
    $region53: #{tpu_custom_call.1} parent=1 // pred_fallthru
      _
    // Predicated region
    $region54: #{tpu_custom_call.1} parent=1 // pred_check
      _
    $region55: #{tpu_custom_call.1} parent=1 // pred_check_branch
      %114 = sbr.rel (0) target = $region57
    $region56: #{tpu_custom_call.1} parent=1 // pred_region
      _
    $region57: #{tpu_custom_call.1} parent=1 // pred_fallthru
      _
    // Predicated region
    $region58: #{tpu_custom_call.1} parent=1 // pred_check
      _
    $region59: #{tpu_custom_call.1} parent=1 // pred_check_branch
      %116 = sbr.rel (0) target = $region61
    $region60: #{tpu_custom_call.1} parent=1 // pred_region
      _
    $region61: #{tpu_custom_call.1} parent=1 // pred_fallthru
      _
    // Predicated region
    $region62: #{tpu_custom_call.1} parent=1 // pred_check
      _
    $region63: #{tpu_custom_call.1} parent=1 // pred_check_branch
      %118 = sbr.rel (0) target = $region65
    $region64: #{tpu_custom_call.1} parent=1 // pred_region
      %s120 = ssub.s32 2048, 2048
      %121 = vsyncadd [#allocation12], %s120
      %s122 = sshll.u32 [#allocation13], 4
      %s123 = int_to_ptr.vmem [resolvable:$true] %s122
      %128 = dma.hbm_to_vmem [thread:$0]  %s15, 2048, %s123, [#allocation12], 128, 128, 8
    $region65: #{tpu_custom_call.1} parent=1 // pred_fallthru
      _
    // Predicated region
    $region66: #{tpu_custom_call.1} parent=1 // pred_check
      _
    $region67: #{tpu_custom_call.1} parent=1 // pred_check_branch
      %130 = sbr.rel (0) target = $region69
    $region68: #{tpu_custom_call.1} parent=1 // pred_region
      _
    $region69: #{tpu_custom_call.1} parent=1 // pred_fallthru
      _
    // Predicated region
    $region70: #{tpu_custom_call.1} parent=1 // pred_check
      _
    $region71: #{tpu_custom_call.1} parent=1 // pred_check_branch
      %132 = sbr.rel (0) target = $region73
    $region72: #{tpu_custom_call.1} parent=1 // pred_region
      %133 = dma.done [#allocation3], 256
    $region73: #{tpu_custom_call.1} parent=1 // pred_fallthru
      _
    // Predicated region
    $region74: #{tpu_custom_call.1} parent=1 // pred_check
      _
    $region75: #{tpu_custom_call.1} parent=1 // pred_check_branch
      %135 = sbr.rel (0) target = $region77
    $region76: #{tpu_custom_call.1} parent=1 // pred_region
      %136 = dma.done [#allocation6], 256
    $region77: #{tpu_custom_call.1} parent=1 // pred_fallthru
      _
    // Predicated region
    $region78: #{tpu_custom_call.1} parent=1 // pred_check
      _
    $region79: #{tpu_custom_call.1} parent=1 // pred_check_branch
      %138 = sbr.rel (0) target = $region81
    $region80: #{tpu_custom_call.1} parent=1 // pred_region
      %139 = dma.done [#allocation6], 2048
    $region81: #{tpu_custom_call.1} parent=1 // pred_fallthru
      _
    // Predicated region
    $region82: #{tpu_custom_call.1} parent=1 // pred_check
      _
    $region83: #{tpu_custom_call.1} parent=1 // pred_check_branch
      %141 = sbr.rel (0) target = $region85
    $region84: #{tpu_custom_call.1} parent=1 // pred_region
      %142 = dma.done [#allocation9], 2048
    $region85: #{tpu_custom_call.1} parent=1 // pred_fallthru
      _
    // Predicated region
    $region86: #{tpu_custom_call.1} parent=1 // pred_check
      _
    $region87: #{tpu_custom_call.1} parent=1 // pred_check_branch
      %144 = sbr.rel (0) target = $region89
    $region88: #{tpu_custom_call.1} parent=1 // pred_region
      %145 = dma.done [#allocation9], 2048
    $region89: #{tpu_custom_call.1} parent=1 // pred_fallthru
      _
    // Predicated region
    $region90: #{tpu_custom_call.1} parent=1 // pred_check
      _
    $region91: #{tpu_custom_call.1} parent=1 // pred_check_branch
      %147 = sbr.rel (0) target = $region93
    $region92: #{tpu_custom_call.1} parent=1 // pred_region
      %148 = dma.done [#allocation12], 2048
    $region93: #{tpu_custom_call.1} parent=1 // pred_fallthru
      _
    // Predicated region
    $region94: #{tpu_custom_call.1} parent=1 // pred_check
      _
    $region95: #{tpu_custom_call.1} parent=1 // pred_check_branch
      %150 = sbr.rel (0) target = $region97
    $region96: #{tpu_custom_call.1} parent=1 // pred_region
      %151 = dma.done [#allocation12], 2048
    $region97: #{tpu_custom_call.1} parent=1 // pred_fallthru
      _
    %v152 = vld [vmem:[#allocation2] sm:$0xff]
    %v153 = vld [vmem:[#allocation2 + $0x8] sm:$0xff]
    %v154 = vld [vmem:[#allocation5] sm:$0xff]
    %v155 = vld [vmem:[#allocation5 + $0x8] sm:$0xff]
    %v156 = vld [vmem:[#allocation7] sm:$0xff]
    %v157 = vld [vmem:[#allocation7 + $0x8] sm:$0xff]
    %v158 = vld [vmem:[#allocation7 + $0x10] sm:$0xff]
    %v159 = vld [vmem:[#allocation7 + $0x18] sm:$0xff]
    %v160 = vld [vmem:[#allocation7 + $0x20] sm:$0xff]
    %v161 = vld [vmem:[#allocation7 + $0x28] sm:$0xff]
    %v162 = vld [vmem:[#allocation7 + $0x30] sm:$0xff]
    %v163 = vld [vmem:[#allocation7 + $0x38] sm:$0xff]
    %v164 = vld [vmem:[#allocation7 + $0x40] sm:$0xff]
    %v165 = vld [vmem:[#allocation7 + $0x48] sm:$0xff]
    %v166 = vld [vmem:[#allocation7 + $0x50] sm:$0xff]
    %v167 = vld [vmem:[#allocation7 + $0x58] sm:$0xff]
    %v168 = vld [vmem:[#allocation7 + $0x60] sm:$0xff]
    %v169 = vld [vmem:[#allocation7 + $0x68] sm:$0xff]
    %v170 = vld [vmem:[#allocation7 + $0x70] sm:$0xff]
    %v171 = vld [vmem:[#allocation7 + $0x78] sm:$0xff]
    %v172 = vld [vmem:[%s3] sm:$0x1]
    %v174 = vlaneseq
    %v175 = vshrl.u32 %v174, 7
    %v176 = vsub.s32 0, %v175
    %v177 = vrot.slane %v172, %v176
    %179 = vmatprep.subr.mxu0 0.0
    %180 = vmatpush1.msra.mxu0 %v156
    %181 = vmatprep.subr.mxu0 0.0
    %182 = vmatpush1.msra.mxu0 %v157
    %183 = vmatprep.subr.mxu0 0.0
    %184 = vmatpush1.msra.mxu0 %v158
    %185 = vmatprep.subr.mxu0 0.0
    %186 = vmatpush1.msra.mxu0 %v159
    %187 = vmatprep.subr.mxu0 0.0
    %188 = vmatpush1.msra.mxu0 %v160
    %189 = vmatprep.subr.mxu0 0.0
    %190 = vmatpush1.msra.mxu0 %v161
    %191 = vmatprep.subr.mxu0 0.0
    %192 = vmatpush1.msra.mxu0 %v162
    %193 = vmatprep.subr.mxu0 0.0
    %194 = vmatpush1.msra.mxu0 %v163
    %195 = vmatprep.subr.mxu0 0.0
    %196 = vmatpush1.msra.mxu0 %v164
    %197 = vmatprep.subr.mxu0 0.0
    %198 = vmatpush1.msra.mxu0 %v165
    %199 = vmatprep.subr.mxu0 0.0
    %200 = vmatpush1.msra.mxu0 %v166
    %201 = vmatprep.subr.mxu0 0.0
    %202 = vmatpush1.msra.mxu0 %v167
    %203 = vmatprep.subr.mxu0 0.0
    %204 = vmatpush1.msra.mxu0 %v168
    %205 = vmatprep.subr.mxu0 0.0
    %206 = vmatpush1.msra.mxu0 %v169
    %207 = vmatprep.subr.mxu0 0.0
    %208 = vmatpush1.msra.mxu0 %v170
    %209 = vmatprep.subr.mxu0 0.0
    %210 = vmatpush1.msra.mxu0 %v171
    %211 = vmatprep.subr.mxu0 0.0
    %212 = vmatpush1.msra.mxu0 0.0
    %213 = vmatprep.subr.mxu0 0.0
    %214 = vmatpush1.msra.mxu0 0.0
    %215 = vmatprep.subr.mxu0 0.0
    %216 = vmatpush1.msra.mxu0 0.0
    %217 = vmatprep.subr.mxu0 0.0
    %218 = vmatpush1.msra.mxu0 0.0
    %219 = vmatprep.subr.mxu0 0.0
    %220 = vmatpush1.msra.mxu0 0.0
    %221 = vmatprep.subr.mxu0 0.0
    %222 = vmatpush1.msra.mxu0 0.0
    %223 = vmatprep.subr.mxu0 0.0
    %224 = vmatpush1.msra.mxu0 0.0
    %225 = vmatprep.subr.mxu0 0.0
    %226 = vmatpush1.msra.mxu0 0.0
    %227 = vmatprep.subr.mxu0 0.0
    %228 = vmatpush1.msra.mxu0 0.0
    %229 = vmatprep.subr.mxu0 0.0
    %230 = vmatpush1.msra.mxu0 0.0
    %231 = vmatprep.subr.mxu0 0.0
    %232 = vmatpush1.msra.mxu0 0.0
    %233 = vmatprep.subr.mxu0 0.0
    %234 = vmatpush1.msra.mxu0 0.0
    %235 = vmatprep.subr.mxu0 0.0
    %236 = vmatpush1.msra.mxu0 0.0
    %237 = vmatprep.subr.mxu0 0.0
    %238 = vmatpush1.msra.mxu0 0.0
    %239 = vmatprep.subr.mxu0 0.0
    %240 = vmatpush1.msra.mxu0 0.0
    %241 = vmatprep.subr.mxu0 0.0
    %242 = vmatpush1.msra.mxu0 0.0
    %243 = vmatprep.mubr.f32.mxu0 0.0
    %244 = vmatmul.mubr.f32.gmra.mrb[0].mxu0 %v152
    %v245 = vpop.f32.mrb[0].mxu0
    %v246 = vadd.f32 %v177, %v245
    %v247 = vpop.f32.mrb[0].mxu0
    %248 = vmatprep.mubr.f32.mxu0 0.0
    %249 = vmatmul.mubr.f32.gmra.mrb[0].mxu0 %v153
    %v250 = vpop.f32.mrb[0].mxu0
    %v251 = vadd.f32 %v177, %v250
    %v252 = vpop.f32.mrb[0].mxu0
    %253 = vdwg.mxu0
    %v254 = vld [vmem:[%s4] sm:$0x1]
    %v255 = vld [vmem:[%s5] sm:$0x1]
    %256 = vadd.xlane.f32.xlu0 %v246
    %v257 = vpop.xlane.xlu0 %256
    %258 = vadd.xlane.f32.xlu0 %v251
    %v259 = vpop.xlane.xlu0 %258
    %v260 = vmul.f32 %v257, 0.015625
    %v261 = vmul.f32 %v259, 0.015625
    %v262 = vsub.f32 %v246, %v260
    %v263 = vsub.f32 %v251, %v261
    %v264 = vlaneseq
    %v265 = vand.u32 %v264, 127
    %vm266 = vcmp.lt.s32.totalorder %v265, 64
    %v267 = vsel %vm266, 1, 0
    %vm268 = vcmp.eq.s32.totalorder %v267, 1
    %v269 = vsel %vm268, %v262, 0.0
    %v270 = vsel %vm268, %v263, 0.0
    %v271 = vmul.f32 %v269, %v269
    %v272 = vmul.f32 %v270, %v270
    %273 = vadd.xlane.f32.xlu0 %v271
    %v274 = vpop.xlane.xlu0 %273
    %275 = vadd.xlane.f32.xlu0 %v272
    %v276 = vpop.xlane.xlu0 %275
    %v277 = vmul.f32 %v274, 0.015625
    %v278 = vmul.f32 %v276, 0.015625
    %v279 = vadd.f32 %v277, 1e-05
    %v280 = vadd.f32 %v278, 1e-05
    %v281 = vrsqrt.pop %v279
    %v282 = vrsqrt.pop %v280
    %v283 = vmul.f32 %v262, %v281
    %v284 = vmul.f32 %v263, %v282
    %v286 = vlaneseq
    %v287 = vshrl.u32 %v286, 7
    %v288 = vsub.s32 0, %v287
    %v289 = vrot.slane %v254, %v288
    %v291 = vmul.f32 %v283, %v289
    %v292 = vmul.f32 %v284, %v289
    %v294 = vlaneseq
    %v295 = vshrl.u32 %v294, 7
    %v296 = vsub.s32 0, %v295
    %v297 = vrot.slane %v255, %v296
    %v299 = vadd.f32 %v291, %v297
    %v300 = vadd.f32 %v292, %v297
    %v301 = vmax.f32 %v299, 0.0
    %v302 = vmax.f32 %v300, 0.0
    %v303 = vld [vmem:[#allocation8] sm:$0xff]
    %v304 = vld [vmem:[#allocation8 + $0x8] sm:$0xff]
    %v305 = vld [vmem:[#allocation8 + $0x10] sm:$0xff]
    %v306 = vld [vmem:[#allocation8 + $0x18] sm:$0xff]
    %v307 = vld [vmem:[#allocation8 + $0x20] sm:$0xff]
    %v308 = vld [vmem:[#allocation8 + $0x28] sm:$0xff]
    %v309 = vld [vmem:[#allocation8 + $0x30] sm:$0xff]
    %v310 = vld [vmem:[#allocation8 + $0x38] sm:$0xff]
    %v311 = vld [vmem:[#allocation8 + $0x40] sm:$0xff]
    %v312 = vld [vmem:[#allocation8 + $0x48] sm:$0xff]
    %v313 = vld [vmem:[#allocation8 + $0x50] sm:$0xff]
    %v314 = vld [vmem:[#allocation8 + $0x58] sm:$0xff]
    %v315 = vld [vmem:[#allocation8 + $0x60] sm:$0xff]
    %v316 = vld [vmem:[#allocation8 + $0x68] sm:$0xff]
    %v317 = vld [vmem:[#allocation8 + $0x70] sm:$0xff]
    %v318 = vld [vmem:[#allocation8 + $0x78] sm:$0xff]
    %v319 = vld [vmem:[#allocation10] sm:$0xff]
    %v320 = vld [vmem:[#allocation10 + $0x8] sm:$0xff]
    %v321 = vld [vmem:[#allocation10 + $0x10] sm:$0xff]
    %v322 = vld [vmem:[#allocation10 + $0x18] sm:$0xff]
    %v323 = vld [vmem:[#allocation10 + $0x20] sm:$0xff]
    %v324 = vld [vmem:[#allocation10 + $0x28] sm:$0xff]
    %v325 = vld [vmem:[#allocation10 + $0x30] sm:$0xff]
    %v326 = vld [vmem:[#allocation10 + $0x38] sm:$0xff]
    %v327 = vld [vmem:[#allocation10 + $0x40] sm:$0xff]
    %v328 = vld [vmem:[#allocation10 + $0x48] sm:$0xff]
    %v329 = vld [vmem:[#allocation10 + $0x50] sm:$0xff]
    %v330 = vld [vmem:[#allocation10 + $0x58] sm:$0xff]
    %v331 = vld [vmem:[#allocation10 + $0x60] sm:$0xff]
    %v332 = vld [vmem:[#allocation10 + $0x68] sm:$0xff]
    %v333 = vld [vmem:[#allocation10 + $0x70] sm:$0xff]
    %v334 = vld [vmem:[#allocation10 + $0x78] sm:$0xff]
    %335 = vmatprep.subr.mxu0 0.0
    %336 = vmatpush1.msra.mxu0 %v319
    %337 = vmatprep.subr.mxu0 0.0
    %338 = vmatpush1.msra.mxu0 %v320
    %339 = vmatprep.subr.mxu0 0.0
    %340 = vmatpush1.msra.mxu0 %v321
    %341 = vmatprep.subr.mxu0 0.0
    %342 = vmatpush1.msra.mxu0 %v322
    %343 = vmatprep.subr.mxu0 0.0
    %344 = vmatpush1.msra.mxu0 %v323
    %345 = vmatprep.subr.mxu0 0.0
    %346 = vmatpush1.msra.mxu0 %v324
    %347 = vmatprep.subr.mxu0 0.0
    %348 = vmatpush1.msra.mxu0 %v325
    %349 = vmatprep.subr.mxu0 0.0
    %350 = vmatpush1.msra.mxu0 %v326
    %351 = vmatprep.subr.mxu0 0.0
    %352 = vmatpush1.msra.mxu0 %v327
    %353 = vmatprep.subr.mxu0 0.0
    %354 = vmatpush1.msra.mxu0 %v328
    %355 = vmatprep.subr.mxu0 0.0
    %356 = vmatpush1.msra.mxu0 %v329
    %357 = vmatprep.subr.mxu0 0.0
    %358 = vmatpush1.msra.mxu0 %v330
    %359 = vmatprep.subr.mxu0 0.0
    %360 = vmatpush1.msra.mxu0 %v331
    %361 = vmatprep.subr.mxu0 0.0
    %362 = vmatpush1.msra.mxu0 %v332
    %363 = vmatprep.subr.mxu0 0.0
    %364 = vmatpush1.msra.mxu0 %v333
    %365 = vmatprep.subr.mxu0 0.0
    %366 = vmatpush1.msra.mxu0 %v334
    %367 = vmatprep.subr.mxu0 0.0
    %368 = vmatpush1.msra.mxu0 0.0
    %369 = vmatprep.subr.mxu0 0.0
    %370 = vmatpush1.msra.mxu0 0.0
    %371 = vmatprep.subr.mxu0 0.0
    %372 = vmatpush1.msra.mxu0 0.0
    %373 = vmatprep.subr.mxu0 0.0
    %374 = vmatpush1.msra.mxu0 0.0
    %375 = vmatprep.subr.mxu0 0.0
    %376 = vmatpush1.msra.mxu0 0.0
    %377 = vmatprep.subr.mxu0 0.0
    %378 = vmatpush1.msra.mxu0 0.0
    %379 = vmatprep.subr.mxu0 0.0
    %380 = vmatpush1.msra.mxu0 0.0
    %381 = vmatprep.subr.mxu0 0.0
    %382 = vmatpush1.msra.mxu0 0.0
    %383 = vmatprep.subr.mxu0 0.0
    %384 = vmatpush1.msra.mxu0 0.0
    %385 = vmatprep.subr.mxu0 0.0
    %386 = vmatpush1.msra.mxu0 0.0
    %387 = vmatprep.subr.mxu0 0.0
    %388 = vmatpush1.msra.mxu0 0.0
    %389 = vmatprep.subr.mxu0 0.0
    %390 = vmatpush1.msra.mxu0 0.0
    %391 = vmatprep.subr.mxu0 0.0
    %392 = vmatpush1.msra.mxu0 0.0
    %393 = vmatprep.subr.mxu0 0.0
    %394 = vmatpush1.msra.mxu0 0.0
    %395 = vmatprep.subr.mxu0 0.0
    %396 = vmatpush1.msra.mxu0 0.0
    %397 = vmatprep.subr.mxu0 0.0
    %398 = vmatpush1.msra.mxu0 0.0
    %399 = vmatprep.mubr.f32.mxu0 0.0
    %400 = vmatmul.mubr.f32.gmra.mrb[0].mxu0 %v154
    %v401 = vpop.f32.mrb[0].mxu0
    %v402 = vadd.f32 0.0, %v401
    %v403 = vpop.f32.mrb[0].mxu0
    %404 = vmatprep.mubr.f32.mxu0 0.0
    %405 = vmatmul.mubr.f32.gmra.mrb[0].mxu0 %v155
    %v406 = vpop.f32.mrb[0].mxu0
    %v407 = vadd.f32 0.0, %v406
    %v408 = vpop.f32.mrb[0].mxu0
    %409 = vdwg.mxu0
    %410 = vmatprep.subr.mxu0 0.0
    %411 = vmatpush1.msra.mxu0 %v303
    %412 = vmatprep.subr.mxu0 0.0
    %413 = vmatpush1.msra.mxu0 %v304
    %414 = vmatprep.subr.mxu0 0.0
    %415 = vmatpush1.msra.mxu0 %v305
    %416 = vmatprep.subr.mxu0 0.0
    %417 = vmatpush1.msra.mxu0 %v306
    %418 = vmatprep.subr.mxu0 0.0
    %419 = vmatpush1.msra.mxu0 %v307
    %420 = vmatprep.subr.mxu0 0.0
    %421 = vmatpush1.msra.mxu0 %v308
    %422 = vmatprep.subr.mxu0 0.0
    %423 = vmatpush1.msra.mxu0 %v309
    %424 = vmatprep.subr.mxu0 0.0
    %425 = vmatpush1.msra.mxu0 %v310
    %426 = vmatprep.subr.mxu0 0.0
    %427 = vmatpush1.msra.mxu0 %v311
    %428 = vmatprep.subr.mxu0 0.0
    %429 = vmatpush1.msra.mxu0 %v312
    %430 = vmatprep.subr.mxu0 0.0
    %431 = vmatpush1.msra.mxu0 %v313
    %432 = vmatprep.subr.mxu0 0.0
    %433 = vmatpush1.msra.mxu0 %v314
    %434 = vmatprep.subr.mxu0 0.0
    %435 = vmatpush1.msra.mxu0 %v315
    %436 = vmatprep.subr.mxu0 0.0
    %437 = vmatpush1.msra.mxu0 %v316
    %438 = vmatprep.subr.mxu0 0.0
    %439 = vmatpush1.msra.mxu0 %v317
    %440 = vmatprep.subr.mxu0 0.0
    %441 = vmatpush1.msra.mxu0 %v318
    %442 = vmatprep.subr.mxu0 0.0
    %443 = vmatpush1.msra.mxu0 0.0
    %444 = vmatprep.subr.mxu0 0.0
    %445 = vmatpush1.msra.mxu0 0.0
    %446 = vmatprep.subr.mxu0 0.0
    %447 = vmatpush1.msra.mxu0 0.0
    %448 = vmatprep.subr.mxu0 0.0
    %449 = vmatpush1.msra.mxu0 0.0
    %450 = vmatprep.subr.mxu0 0.0
    %451 = vmatpush1.msra.mxu0 0.0
    %452 = vmatprep.subr.mxu0 0.0
    %453 = vmatpush1.msra.mxu0 0.0
    %454 = vmatprep.subr.mxu0 0.0
    %455 = vmatpush1.msra.mxu0 0.0
    %456 = vmatprep.subr.mxu0 0.0
    %457 = vmatpush1.msra.mxu0 0.0
    %458 = vmatprep.subr.mxu0 0.0
    %459 = vmatpush1.msra.mxu0 0.0
    %460 = vmatprep.subr.mxu0 0.0
    %461 = vmatpush1.msra.mxu0 0.0
    %462 = vmatprep.subr.mxu0 0.0
    %463 = vmatpush1.msra.mxu0 0.0
    %464 = vmatprep.subr.mxu0 0.0
    %465 = vmatpush1.msra.mxu0 0.0
    %466 = vmatprep.subr.mxu0 0.0
    %467 = vmatpush1.msra.mxu0 0.0
    %468 = vmatprep.subr.mxu0 0.0
    %469 = vmatpush1.msra.mxu0 0.0
    %470 = vmatprep.subr.mxu0 0.0
    %471 = vmatpush1.msra.mxu0 0.0
    %472 = vmatprep.subr.mxu0 0.0
    %473 = vmatpush1.msra.mxu0 0.0
    %474 = vmatprep.mubr.f32.mxu0 0.0
    %475 = vmatmul.mubr.f32.gmra.mrb[0].mxu0 %v301
    %v476 = vpop.f32.mrb[0].mxu0
    %v477 = vadd.f32 %v402, %v476
    %v478 = vpop.f32.mrb[0].mxu0
    %479 = vmatprep.mubr.f32.mxu0 0.0
    %480 = vmatmul.mubr.f32.gmra.mrb[0].mxu0 %v302
    %v481 = vpop.f32.mrb[0].mxu0
    %v482 = vadd.f32 %v407, %v481
    %v483 = vpop.f32.mrb[0].mxu0
    %484 = vdwg.mxu0
    %v485 = vld [vmem:[%s8] sm:$0x1]
    %v487 = vlaneseq
    %v488 = vshrl.u32 %v487, 7
    %v489 = vsub.s32 0, %v488
    %v490 = vrot.slane %v485, %v489
    %v492 = vadd.f32 %v477, %v490
    %v493 = vadd.f32 %v482, %v490
    %v494 = vld [vmem:[%s9] sm:$0x1]
    %v495 = vld [vmem:[%s10] sm:$0x1]
    %496 = vadd.xlane.f32.xlu0 %v492
    %v497 = vpop.xlane.xlu0 %496
    %498 = vadd.xlane.f32.xlu0 %v493
    %v499 = vpop.xlane.xlu0 %498
    %v500 = vmul.f32 %v497, 0.020833334
    %v501 = vmul.f32 %v499, 0.020833334
    %v502 = vsub.f32 %v492, %v500
    %v503 = vsub.f32 %v493, %v501
    %vm504 = vcmp.lt.s32.totalorder %v265, 48
    %v505 = vsel %vm504, 1, 0
    %vm506 = vcmp.eq.s32.totalorder %v505, 1
    %v507 = vsel %vm506, %v502, 0.0
    %v508 = vsel %vm506, %v503, 0.0
    %v509 = vmul.f32 %v507, %v507
    %v510 = vmul.f32 %v508, %v508
    %511 = vadd.xlane.f32.xlu0 %v509
    %v512 = vpop.xlane.xlu0 %511
    %513 = vadd.xlane.f32.xlu0 %v510
    %v514 = vpop.xlane.xlu0 %513
    %v515 = vmul.f32 %v512, 0.020833334
    %v516 = vmul.f32 %v514, 0.020833334
    %v517 = vadd.f32 %v515, 1e-05
    %v518 = vadd.f32 %v516, 1e-05
    %v519 = vrsqrt.pop %v517
    %v520 = vrsqrt.pop %v518
    %v521 = vmul.f32 %v502, %v519
    %v522 = vmul.f32 %v503, %v520
    %v524 = vlaneseq
    %v525 = vshrl.u32 %v524, 7
    %v526 = vsub.s32 0, %v525
    %v527 = vrot.slane %v494, %v526
    %v529 = vmul.f32 %v521, %v527
    %v530 = vmul.f32 %v522, %v527
    %v532 = vlaneseq
    %v533 = vshrl.u32 %v532, 7
    %v534 = vsub.s32 0, %v533
    %v535 = vrot.slane %v495, %v534
    %v537 = vadd.f32 %v529, %v535
    %v538 = vadd.f32 %v530, %v535
    %v539 = vmax.f32 %v537, 0.0
    %v540 = vmax.f32 %v538, 0.0
    %v541 = vld [vmem:[#allocation11] sm:$0xff]
    %v542 = vld [vmem:[#allocation11 + $0x8] sm:$0xff]
    %v543 = vld [vmem:[#allocation11 + $0x10] sm:$0xff]
    %v544 = vld [vmem:[#allocation11 + $0x18] sm:$0xff]
    %v545 = vld [vmem:[#allocation11 + $0x20] sm:$0xff]
    %v546 = vld [vmem:[#allocation11 + $0x28] sm:$0xff]
    %v547 = vld [vmem:[#allocation11 + $0x30] sm:$0xff]
    %v548 = vld [vmem:[#allocation11 + $0x38] sm:$0xff]
    %v549 = vld [vmem:[#allocation11 + $0x40] sm:$0xff]
    %v550 = vld [vmem:[#allocation11 + $0x48] sm:$0xff]
    %v551 = vld [vmem:[#allocation11 + $0x50] sm:$0xff]
    %v552 = vld [vmem:[#allocation11 + $0x58] sm:$0xff]
    %v553 = vld [vmem:[#allocation11 + $0x60] sm:$0xff]
    %v554 = vld [vmem:[#allocation11 + $0x68] sm:$0xff]
    %v555 = vld [vmem:[#allocation11 + $0x70] sm:$0xff]
    %v556 = vld [vmem:[#allocation11 + $0x78] sm:$0xff]
    %v557 = vld [vmem:[%s12] sm:$0x1]
    %v559 = vlaneseq
    %v560 = vshrl.u32 %v559, 7
    %v561 = vsub.s32 0, %v560
    %v562 = vrot.slane %v557, %v561
    %564 = vmatprep.subr.mxu0 0.0
    %565 = vmatpush1.msra.mxu0 %v541
    %566 = vmatprep.subr.mxu0 0.0
    %567 = vmatpush1.msra.mxu0 %v542
    %568 = vmatprep.subr.mxu0 0.0
    %569 = vmatpush1.msra.mxu0 %v543
    %570 = vmatprep.subr.mxu0 0.0
    %571 = vmatpush1.msra.mxu0 %v544
    %572 = vmatprep.subr.mxu0 0.0
    %573 = vmatpush1.msra.mxu0 %v545
    %574 = vmatprep.subr.mxu0 0.0
    %575 = vmatpush1.msra.mxu0 %v546
    %576 = vmatprep.subr.mxu0 0.0
    %577 = vmatpush1.msra.mxu0 %v547
    %578 = vmatprep.subr.mxu0 0.0
    %579 = vmatpush1.msra.mxu0 %v548
    %580 = vmatprep.subr.mxu0 0.0
    %581 = vmatpush1.msra.mxu0 %v549
    %582 = vmatprep.subr.mxu0 0.0
    %583 = vmatpush1.msra.mxu0 %v550
    %584 = vmatprep.subr.mxu0 0.0
    %585 = vmatpush1.msra.mxu0 %v551
    %586 = vmatprep.subr.mxu0 0.0
    %587 = vmatpush1.msra.mxu0 %v552
    %588 = vmatprep.subr.mxu0 0.0
    %589 = vmatpush1.msra.mxu0 %v553
    %590 = vmatprep.subr.mxu0 0.0
    %591 = vmatpush1.msra.mxu0 %v554
    %592 = vmatprep.subr.mxu0 0.0
    %593 = vmatpush1.msra.mxu0 %v555
    %594 = vmatprep.subr.mxu0 0.0
    %595 = vmatpush1.msra.mxu0 %v556
    %596 = vmatprep.subr.mxu0 0.0
    %597 = vmatpush1.msra.mxu0 0.0
    %598 = vmatprep.subr.mxu0 0.0
    %599 = vmatpush1.msra.mxu0 0.0
    %600 = vmatprep.subr.mxu0 0.0
    %601 = vmatpush1.msra.mxu0 0.0
    %602 = vmatprep.subr.mxu0 0.0
    %603 = vmatpush1.msra.mxu0 0.0
    %604 = vmatprep.subr.mxu0 0.0
    %605 = vmatpush1.msra.mxu0 0.0
    %606 = vmatprep.subr.mxu0 0.0
    %607 = vmatpush1.msra.mxu0 0.0
    %608 = vmatprep.subr.mxu0 0.0
    %609 = vmatpush1.msra.mxu0 0.0
    %610 = vmatprep.subr.mxu0 0.0
    %611 = vmatpush1.msra.mxu0 0.0
    %612 = vmatprep.subr.mxu0 0.0
    %613 = vmatpush1.msra.mxu0 0.0
    %614 = vmatprep.subr.mxu0 0.0
    %615 = vmatpush1.msra.mxu0 0.0
    %616 = vmatprep.subr.mxu0 0.0
    %617 = vmatpush1.msra.mxu0 0.0
    %618 = vmatprep.subr.mxu0 0.0
    %619 = vmatpush1.msra.mxu0 0.0
    %620 = vmatprep.subr.mxu0 0.0
    %621 = vmatpush1.msra.mxu0 0.0
    %622 = vmatprep.subr.mxu0 0.0
    %623 = vmatpush1.msra.mxu0 0.0
    %624 = vmatprep.subr.mxu0 0.0
    %625 = vmatpush1.msra.mxu0 0.0
    %626 = vmatprep.subr.mxu0 0.0
    %627 = vmatpush1.msra.mxu0 0.0
    %628 = vmatprep.mubr.f32.mxu0 0.0
    %629 = vmatmul.mubr.f32.gmra.mrb[0].mxu0 %v539
    %v630 = vpop.f32.mrb[0].mxu0
    %v631 = vadd.f32 %v562, %v630
    %v632 = vpop.f32.mrb[0].mxu0
    %633 = vmatprep.mubr.f32.mxu0 0.0
    %634 = vmatmul.mubr.f32.gmra.mrb[0].mxu0 %v540
    %v635 = vpop.f32.mrb[0].mxu0
    %v636 = vadd.f32 %v562, %v635
    %v637 = vpop.f32.mrb[0].mxu0
    %638 = vdwg.mxu0
    %v639 = vld [vmem:[%s13] sm:$0x1]
    %v640 = vld [vmem:[%s14] sm:$0x1]
    %641 = vadd.xlane.f32.xlu0 %v631
    %v642 = vpop.xlane.xlu0 %641
    %643 = vadd.xlane.f32.xlu0 %v636
    %v644 = vpop.xlane.xlu0 %643
    %v645 = vmul.f32 %v642, 0.03125
    %v646 = vmul.f32 %v644, 0.03125
    %v647 = vsub.f32 %v631, %v645
    %v648 = vsub.f32 %v636, %v646
    %vm649 = vcmp.lt.s32.totalorder %v265, 32
    %v650 = vsel %vm649, 1, 0
    %vm651 = vcmp.eq.s32.totalorder %v650, 1
    %v652 = vsel %vm651, %v647, 0.0
    %v653 = vsel %vm651, %v648, 0.0
    %v654 = vmul.f32 %v652, %v652
    %v655 = vmul.f32 %v653, %v653
    %656 = vadd.xlane.f32.xlu0 %v654
    %v657 = vpop.xlane.xlu0 %656
    %658 = vadd.xlane.f32.xlu0 %v655
    %v659 = vpop.xlane.xlu0 %658
    %v660 = vmul.f32 %v657, 0.03125
    %v661 = vmul.f32 %v659, 0.03125
    %v662 = vadd.f32 %v660, 1e-05
    %v663 = vadd.f32 %v661, 1e-05
    %v664 = vrsqrt.pop %v662
    %v665 = vrsqrt.pop %v663
    %v666 = vmul.f32 %v647, %v664
    %v667 = vmul.f32 %v648, %v665
    %v669 = vlaneseq
    %v670 = vshrl.u32 %v669, 7
    %v671 = vsub.s32 0, %v670
    %v672 = vrot.slane %v639, %v671
    %v674 = vmul.f32 %v666, %v672
    %v675 = vmul.f32 %v667, %v672
    %v677 = vlaneseq
    %v678 = vshrl.u32 %v677, 7
    %v679 = vsub.s32 0, %v678
    %v680 = vrot.slane %v640, %v679
    %v682 = vadd.f32 %v674, %v680
    %v683 = vadd.f32 %v675, %v680
    %v684 = vmax.f32 %v682, 0.0
    %v685 = vmax.f32 %v683, 0.0
    %v686 = vld [vmem:[#allocation13] sm:$0xff]
    %v687 = vld [vmem:[#allocation13 + $0x8] sm:$0xff]
    %v688 = vld [vmem:[#allocation13 + $0x10] sm:$0xff]
    %v689 = vld [vmem:[#allocation13 + $0x18] sm:$0xff]
    %v690 = vld [vmem:[#allocation13 + $0x20] sm:$0xff]
    %v691 = vld [vmem:[#allocation13 + $0x28] sm:$0xff]
    %v692 = vld [vmem:[#allocation13 + $0x30] sm:$0xff]
    %v693 = vld [vmem:[#allocation13 + $0x38] sm:$0xff]
    %v694 = vld [vmem:[#allocation13 + $0x40] sm:$0xff]
    %v695 = vld [vmem:[#allocation13 + $0x48] sm:$0xff]
    %v696 = vld [vmem:[#allocation13 + $0x50] sm:$0xff]
    %v697 = vld [vmem:[#allocation13 + $0x58] sm:$0xff]
    %v698 = vld [vmem:[#allocation13 + $0x60] sm:$0xff]
    %v699 = vld [vmem:[#allocation13 + $0x68] sm:$0xff]
    %v700 = vld [vmem:[#allocation13 + $0x70] sm:$0xff]
    %v701 = vld [vmem:[#allocation13 + $0x78] sm:$0xff]
    %v702 = vld [vmem:[%s16] sm:$0x1]
    %v704 = vlaneseq
    %v705 = vshrl.u32 %v704, 7
    %v706 = vsub.s32 0, %v705
    %v707 = vrot.slane %v702, %v706
    %709 = vmatprep.subr.mxu0 0.0
    %710 = vmatpush1.msra.mxu0 %v686
    %711 = vmatprep.subr.mxu0 0.0
    %712 = vmatpush1.msra.mxu0 %v687
    %713 = vmatprep.subr.mxu0 0.0
    %714 = vmatpush1.msra.mxu0 %v688
    %715 = vmatprep.subr.mxu0 0.0
    %716 = vmatpush1.msra.mxu0 %v689
    %717 = vmatprep.subr.mxu0 0.0
    %718 = vmatpush1.msra.mxu0 %v690
    %719 = vmatprep.subr.mxu0 0.0
    %720 = vmatpush1.msra.mxu0 %v691
    %721 = vmatprep.subr.mxu0 0.0
    %722 = vmatpush1.msra.mxu0 %v692
    %723 = vmatprep.subr.mxu0 0.0
    %724 = vmatpush1.msra.mxu0 %v693
    %725 = vmatprep.subr.mxu0 0.0
    %726 = vmatpush1.msra.mxu0 %v694
    %727 = vmatprep.subr.mxu0 0.0
    %728 = vmatpush1.msra.mxu0 %v695
    %729 = vmatprep.subr.mxu0 0.0
    %730 = vmatpush1.msra.mxu0 %v696
    %731 = vmatprep.subr.mxu0 0.0
    %732 = vmatpush1.msra.mxu0 %v697
    %733 = vmatprep.subr.mxu0 0.0
    %734 = vmatpush1.msra.mxu0 %v698
    %735 = vmatprep.subr.mxu0 0.0
    %736 = vmatpush1.msra.mxu0 %v699
    %737 = vmatprep.subr.mxu0 0.0
    %738 = vmatpush1.msra.mxu0 %v700
    %739 = vmatprep.subr.mxu0 0.0
    %740 = vmatpush1.msra.mxu0 %v701
    %741 = vmatprep.subr.mxu0 0.0
    %742 = vmatpush1.msra.mxu0 0.0
    %743 = vmatprep.subr.mxu0 0.0
    %744 = vmatpush1.msra.mxu0 0.0
    %745 = vmatprep.subr.mxu0 0.0
    %746 = vmatpush1.msra.mxu0 0.0
    %747 = vmatprep.subr.mxu0 0.0
    %748 = vmatpush1.msra.mxu0 0.0
    %749 = vmatprep.subr.mxu0 0.0
    %750 = vmatpush1.msra.mxu0 0.0
    %751 = vmatprep.subr.mxu0 0.0
    %752 = vmatpush1.msra.mxu0 0.0
    %753 = vmatprep.subr.mxu0 0.0
    %754 = vmatpush1.msra.mxu0 0.0
    %755 = vmatprep.subr.mxu0 0.0
    %756 = vmatpush1.msra.mxu0 0.0
    %757 = vmatprep.subr.mxu0 0.0
    %758 = vmatpush1.msra.mxu0 0.0
    %759 = vmatprep.subr.mxu0 0.0
    %760 = vmatpush1.msra.mxu0 0.0
    %761 = vmatprep.subr.mxu0 0.0
    %762 = vmatpush1.msra.mxu0 0.0
    %763 = vmatprep.subr.mxu0 0.0
    %764 = vmatpush1.msra.mxu0 0.0
    %765 = vmatprep.subr.mxu0 0.0
    %766 = vmatpush1.msra.mxu0 0.0
    %767 = vmatprep.subr.mxu0 0.0
    %768 = vmatpush1.msra.mxu0 0.0
    %769 = vmatprep.subr.mxu0 0.0
    %770 = vmatpush1.msra.mxu0 0.0
    %771 = vmatprep.subr.mxu0 0.0
    %772 = vmatpush1.msra.mxu0 0.0
    %773 = vmatprep.mubr.f32.mxu0 0.0
    %774 = vmatmul.mubr.f32.gmra.mrb[0].mxu0 %v684
    %v775 = vpop.f32.mrb[0].mxu0
    %v776 = vadd.f32 %v707, %v775
    %v777 = vpop.f32.mrb[0].mxu0
    %778 = vmatprep.mubr.f32.mxu0 0.0
    %779 = vmatmul.mubr.f32.gmra.mrb[0].mxu0 %v685
    %v780 = vpop.f32.mrb[0].mxu0
    %v781 = vadd.f32 %v707, %v780
    %v782 = vpop.f32.mrb[0].mxu0
    %783 = vdwg.mxu0
    %784 = vst [vmem:[#allocation14] sm:$0xff] %v776
    %785 = vst [vmem:[#allocation14 + $0x8] sm:$0xff] %v781
    // Predicated region
    $region98: #{tpu_custom_call.1} parent=1 // pred_check
      _
    $region99: #{tpu_custom_call.1} parent=1 // pred_check_branch
      %787 = sbr.rel (0) target = $region101
    $region100: #{tpu_custom_call.1} parent=1 // pred_region
      %s789 = ssub.s32 256, 256
      %790 = vsyncadd [#allocation4], %s789
      %s791 = sshll.u32 [#allocation14], 4
      %s792 = int_to_ptr.vmem [resolvable:$true] %s791
      %797 = dma.vmem_to_hbm [thread:$0]  %s792, 256, %s17, [#allocation4], 128, 128, 8
    $region101: #{tpu_custom_call.1} parent=1 // pred_fallthru
      _
    // Predicated region
    $region102: #{tpu_custom_call.1} parent=1 // pred_check
      _
    $region103: #{tpu_custom_call.1} parent=1 // pred_check_branch
      %799 = sbr.rel (0) target = $region105
    $region104: #{tpu_custom_call.1} parent=1 // pred_region
      %800 = dma.done [#allocation4], 256
    $region105: #{tpu_custom_call.1} parent=1 // pred_fallthru
      _
    %801 = vsyncpa [#allocation3], 1
    %802 = vsyncpa [#allocation6], 1
    %803 = vsyncpa [#allocation9], 1
    %804 = vsyncpa [#allocation12], 1
    %805 = vsyncpa [#allocation4], 1

</llo_original>
